<compile_context>
chip_gen: v7x
topology: tpu7x:2x2x1
jax: 0.10.0
libtpu: 0.0.40
codegen_flags: <defaults>
</compile_context>

<pallas_src>
import functools
import math

import jax
import jax.numpy as jnp
from jax.experimental import pallas as pl
from jax.experimental.pallas import tpu as pltpu


# ----------------------------------------------------------------------------
# meta padding (reflect on H, centered periodic on W) -- plain JAX glue.
# ----------------------------------------------------------------------------
def pad2d_meta(x_nchw, padding_y, padding_x):
    py, px = padding_y // 2, padding_x // 2
    x = jnp.pad(x_nchw, ((0, 0), (0, 0), (py, py), (0, 0)), mode="reflect")
    x = jnp.pad(x, ((0, 0), (0, 0), (0, 0), (px, px)), mode="wrap")
    return x


def _phase_taps(K, s, off, e):
    """Per output phase r in [0, s): list of (kernel tap k, input offset d)."""
    taps = []
    for r in range(s):
        tr = []
        for k in range(K):
            if (r + k + off - e) % s == 0:
                tr.append((k, (r + k + off - e) // s))
        taps.append(tr)
    return taps


# ----------------------------------------------------------------------------
# Pallas kernel: one grid step = one batch image.  Build the shared im2col
# panel with static full-lane row-stride slices, then one MXU matmul computes
# every (phase, Cout) output row at once.
# ----------------------------------------------------------------------------
def _make_kernel(Cin, off_pairs, pb, Wpp, Lcols):
    def kernel(x_ref, w_ref, b_ref, o_ref, col_ref):
        # x_ref  : (1, Cin, Hpp*Wpp)   bf16  flattened meta+zero padded input
        # w_ref  : (s*s*Cout, D*D*Cin) bf16  phase-stacked packed weights
        # b_ref  : (s*s*Cout, 1)       f32
        # o_ref  : (1, s*s*Cout, H*Wpp)      phase-stacked output (lane-dense)
        # col_ref: (D*D*Cin, H*Wpp)    bf16  shared im2col panel (VMEM scratch)
        for t, (dh, dw) in enumerate(off_pairs):        # static, fully unrolled
            start = (dh + pb) * Wpp + (dw + pb)         # static lane offset
            col_ref[t * Cin:(t + 1) * Cin, :] = x_ref[0, :, start:start + Lcols]

        # Single MXU contraction: (M, D^2*Cin) x (D^2*Cin, H*Wpp) -> (M, H*Wpp)
        acc = jax.lax.dot_general(
            w_ref[...], col_ref[...],
            dimension_numbers=(((1,), (0,)), ((), ())),
            preferred_element_type=jnp.float32)
        o_ref[0] = (acc + b_ref[...]).astype(o_ref.dtype)

    return kernel


@functools.partial(jax.jit, static_argnums=(3, 4))
def conv_transpose2d_meta(x_nchw, weight, bias, kernel_size, stride):
    """Forward pass of ConvTranspose2d_meta.

    x_nchw : (N, Cin, H, W)
    weight : (Cin, Cout, K, K)   (PyTorch ConvTranspose2d layout, groups=1)
    bias   : (Cout,)
    """
    N, Cin, H, W = x_nchw.shape
    K, s = kernel_size, stride
    Cout = weight.shape[1]

    # module bookkeeping (all static Python ints)
    padding = K - 1                        # meta padding (must be even -> K odd)
    assert padding % 2 == 0, "kernel_size must be odd (reflect pad of K-1)"
    trim = padding * s // 2
    pad = (K - s) // 2
    output_padding = (K - s) % 2
    e = K - 1 - pad                        # zero border of the dilated form
    off = output_padding + trim            # crop folded into the input offset

    Ho = (H + K - 2) * s + K - 2 * pad - output_padding - 2 * trim
    assert Ho == H * s, "unsupported (kernel_size, stride) configuration"

    # ---- static phase / tap metadata ----------------------------------------
    taps = _phase_taps(K, s, off, e)                   # per phase: [(k, d), ...]
    doffs = sorted({d for tr in taps for (_, d) in tr})  # distinct offsets/axis
    Dn = len(doffs)
    dpos = {d: i for i, d in enumerate(doffs)}
    maxd, mind = max(doffs), min(doffs)
    pb = max(0, -mind)                     # top/left zero pad so m+d >= 0

    py = px = padding // 2
    Hp, Wp = H + 2 * py, W + 2 * px        # after meta padding

    # Columns: need cols 0 .. W+maxd+pb-1 valid; opportunistically round Wpp so
    # H*Wpp is a multiple of 128 -> fully unmasked panel/output lane stores.
    Wpp = max(Wp + pb, W + maxd + pb)
    lane_m = 128 // math.gcd(H, 128)
    Wpp_r = ((Wpp + lane_m - 1) // lane_m) * lane_m
    if Wpp_r - Wpp <= 32:
        Wpp = Wpp_r
    pad_w_r = Wpp - (Wp + pb)              # right zero pad on W (>= 0)

    # Rows: need rows 0 .. H+maxd+pb-1 valid, plus one slack row so the
    # over-long row-stride slices (length H*Wpp) never run out of range.
    rows_needed = H + maxd + pb + (1 if (maxd + pb) > 0 else 0)
    Hpp = max(Hp + pb, rows_needed)
    pad_h_b = Hpp - (Hp + pb)              # bottom zero pad on H (>= 0)

    Lcols = H * Wpp                        # matmul N dim (junk cols j>=W dropped)
    Flat = Hpp * Wpp
    M = s * s * Cout                       # all phases stacked on the M axis
    Kd = Dn * Dn * Cin                     # shared panel depth

    # ---- input: bf16 FIRST, then meta pad + zero pad + flatten (no transpose)
    xb = pad2d_meta(x_nchw.astype(jnp.bfloat16), padding, padding)
    xb = jnp.pad(xb, ((0, 0), (0, 0), (pb, pad_h_b), (pb, pad_w_r)))
    x_flat = xb.reshape(N, Cin, Flat)

    # ---- packed weights: one (Cout, Cin) column block per distinct (dh, dw)
    # offset, placed per phase; offsets a phase does not use stay exactly zero.
    w_packed = jnp.zeros((M, Kd), weight.dtype)
    for rp in range(s):
        for rq in range(s):
            p = rp * s + rq
            for (kh, dh) in taps[rp]:
                for (kw, dw) in taps[rq]:
                    t = dpos[dh] * Dn + dpos[dw]
                    blk = weight[:, :, K - 1 - kh, K - 1 - kw].T   # (Cout, Cin)
                    w_packed = w_packed.at[p * Cout:(p + 1) * Cout,
                                           t * Cin:(t + 1) * Cin].set(blk)
    w_packed = w_packed.astype(jnp.bfloat16)
    b_packed = jnp.tile(bias.astype(jnp.float32), s * s).reshape(M, 1)

    off_pairs = [(dh, dw) for dh in doffs for dw in doffs]   # static constants
    kernel = _make_kernel(Cin, off_pairs, pb, Wpp, Lcols)

    out_k = pl.pallas_call(
        kernel,
        out_shape=jax.ShapeDtypeStruct((N, M, Lcols), x_nchw.dtype),
        grid_spec=pltpu.PrefetchScalarGridSpec(
            num_scalar_prefetch=0,
            grid=(N,),
            in_specs=[
                pl.BlockSpec((1, Cin, Flat), lambda n: (n, 0, 0)),
                pl.BlockSpec((M, Kd), lambda n: (0, 0)),
                pl.BlockSpec((M, 1), lambda n: (0, 0)),
            ],
            out_specs=pl.BlockSpec((1, M, Lcols), lambda n: (n, 0, 0)),
            scratch_shapes=[pltpu.VMEM((Kd, Lcols), jnp.bfloat16)],
        ),
        compiler_params=pltpu.CompilerParams(
            dimension_semantics=("parallel",),       # shard batch (v7x megacore)
            vmem_limit_bytes=32 * 1024 * 1024),
    )(x_flat, w_packed, b_packed)

    # ---- drop junk columns, interleave the s*s phase planes back into NCHW --
    out = out_k.reshape(N, s, s, Cout, H, Wpp)[..., :W]
    out = jnp.transpose(out, (0, 3, 4, 1, 5, 2))      # (N, Cout, H, rp, W, rq)
    return out.reshape(N, Cout, H * s, W * s)


# ----------------------------------------------------------------------------
# Pure-JAX reference (scatter-style transposed conv) for correctness checking.
# ----------------------------------------------------------------------------
def _ref_conv_transpose2d(x, w, b, s, pad):
    N, Cin, H, W = x.shape
    _, Cout, K, _ = w.shape
    Hf, Wf = (H - 1) * s + K, (W - 1) * s + K
    y = jnp.zeros((N, Cout, Hf, Wf), jnp.float32)
    for kh in range(K):
        for kw in range(K):
            contrib = jnp.einsum("nihw,io->nohw", x, w[:, :, kh, kw],
                                 precision=jax.lax.Precision.HIGHEST)
            y = y.at[:, :, kh:kh + (H - 1) * s + 1:s,
                           kw:kw + (W - 1) * s + 1:s].add(contrib)
    Ho, Wo = (H - 1) * s - 2 * pad + K, (W - 1) * s - 2 * pad + K
    return y[:, :, pad:pad + Ho, pad:pad + Wo] + b[None, :, None, None]


def _ref_forward(x, w, b, K, s):
    padding = K - 1
    trim = padding * s // 2
    pad = (K - s) // 2
    output_padding = (K - s) % 2
    xp = pad2d_meta(x, padding, padding)
    y = _ref_conv_transpose2d(xp, w, b, s, pad)
    if output_padding:
        y = y[:, :, 1:, 1:]
    if trim:
        y = y[:, :, trim:-trim, trim:-trim]
    return y


# ----------------------------------------------------------------------------
if __name__ == "__main__":
    key = jax.random.PRNGKey(0)
    N, Cin, H, W = 2, 4, 16, 16
    Cout = 8

    for K in (3, 5):                       # K must be odd (reflect pad of K-1)
        k1, k2, k3 = jax.random.split(jax.random.fold_in(key, K), 3)
        x = jax.random.normal(k1, (N, Cin, H, W), jnp.float32)
        bound = 1.0 / float(Cin * K * K) ** 0.5
        weight = jax.random.uniform(k2, (Cin, Cout, K, K), jnp.float32,
                                    -bound, bound)
        bias = jax.random.uniform(k3, (Cout,), jnp.float32, -bound, bound)

        for stride in (2, 1):              # GAN upsampling case + identity case
            y = conv_transpose2d_meta(x, weight, bias, K, stride)
            y = jax.block_until_ready(y)
            assert y.shape == (N, Cout, H * stride, W * stride), (K, stride, y.shape)

            # Exact-math check: the kernel's only numerical deviation is bf16
            # quantization of x / weight, so compare against a reference fed
            # bf16-rounded inputs (f32 accumulation on both sides).
            x_q = x.astype(jnp.bfloat16).astype(jnp.float32)
            w_q = weight.astype(jnp.bfloat16).astype(jnp.float32)
            y_ref_q = _ref_forward(x_q, w_q, bias, K, stride)
            err_q = float(jnp.max(jnp.abs(y - y_ref_q)))
            assert err_q < 2e-3, ("quantized-input mismatch", K, stride, err_q)

            # Overall fidelity vs the exact f32 reference (bf16 quantization
            # noise is bounded well below this).
            y_ref = _ref_forward(x, weight, bias, K, stride)
            err = float(jnp.max(jnp.abs(y - y_ref)))
            assert err < 5e-2, ("f32 reference mismatch", K, stride, err)

    print("KERNEL_OK")
</pallas_src>

<mosaic_0001>
module attributes {stable_mosaic.version = 11 : i64} {
  func.func @kernel(%arg0: i32, %arg1: memref<1x4x456xbf16, #tpu.memory_space<vmem>>, %arg2: memref<32x16xbf16, #tpu.memory_space<vmem>>, %arg3: memref<32x1xf32, #tpu.memory_space<vmem>>, %arg4: memref<1x32x384xf32, #tpu.memory_space<vmem>>, %arg5: memref<16x384xbf16, #tpu.memory_space<vmem>>) attributes {dimension_semantics = [#tpu.dimension_semantics<parallel>], iteration_bounds = array<i64: 2>, scalar_prefetch = 0 : i64, scratch_operands = 1 : i64, tpu.core_type = #tpu.core_type<tc>, window_params = [{transform_indices = @transform_0, window_bounds = array<i64: 1, 4, 456>}, {pipeline_mode = #tpu.pipeline_mode<synchronous>, transform_indices = @transform_1, window_bounds = array<i64: 32, 16>}, {pipeline_mode = #tpu.pipeline_mode<synchronous>, transform_indices = @transform_2, window_bounds = array<i64: 32, 1>}, {transform_indices = @transform_3, window_bounds = array<i64: 1, 32, 384>}]} {
    %c0 = arith.constant 0 : index
    %c0_0 = arith.constant 0 : index
    %c25 = arith.constant 25 : index
    %0 = vector.load %arg1[%c0, %c0_0, %c25] : memref<1x4x456xbf16, #tpu.memory_space<vmem>>, vector<1x4x384xbf16>
    %1 = vector.shape_cast %0 : vector<1x4x384xbf16> to vector<4x384xbf16>
    %c0_1 = arith.constant 0 : index
    %c0_2 = arith.constant 0 : index
    %2 = vector.load %arg5[%c0_1, %c0_2] : memref<16x384xbf16, #tpu.memory_space<vmem>>, vector<4x384xbf16>
    tpu.vector_store %arg5[%c0_1, %c0_2], %1 {strides = array<i32>} : memref<16x384xbf16, #tpu.memory_space<vmem>>, vector<4x384xbf16>,
    %c0_3 = arith.constant 0 : index
    %c0_4 = arith.constant 0 : index
    %c26 = arith.constant 26 : index
    %3 = vector.load %arg1[%c0_3, %c0_4, %c26] : memref<1x4x456xbf16, #tpu.memory_space<vmem>>, vector<1x4x384xbf16>
    %4 = vector.shape_cast %3 : vector<1x4x384xbf16> to vector<4x384xbf16>
    %c4 = arith.constant 4 : index
    %c0_5 = arith.constant 0 : index
    %5 = vector.load %arg5[%c4, %c0_5] : memref<16x384xbf16, #tpu.memory_space<vmem>>, vector<4x384xbf16>
    tpu.vector_store %arg5[%c4, %c0_5], %4 {strides = array<i32>} : memref<16x384xbf16, #tpu.memory_space<vmem>>, vector<4x384xbf16>,
    %c0_6 = arith.constant 0 : index
    %c0_7 = arith.constant 0 : index
    %c49 = arith.constant 49 : index
    %6 = vector.load %arg1[%c0_6, %c0_7, %c49] : memref<1x4x456xbf16, #tpu.memory_space<vmem>>, vector<1x4x384xbf16>
    %7 = vector.shape_cast %6 : vector<1x4x384xbf16> to vector<4x384xbf16>
    %c8 = arith.constant 8 : index
    %c0_8 = arith.constant 0 : index
    %8 = vector.load %arg5[%c8, %c0_8] : memref<16x384xbf16, #tpu.memory_space<vmem>>, vector<4x384xbf16>
    tpu.vector_store %arg5[%c8, %c0_8], %7 {strides = array<i32>} : memref<16x384xbf16, #tpu.memory_space<vmem>>, vector<4x384xbf16>,
    %c0_9 = arith.constant 0 : index
    %c0_10 = arith.constant 0 : index
    %c50 = arith.constant 50 : index
    %9 = vector.load %arg1[%c0_9, %c0_10, %c50] : memref<1x4x456xbf16, #tpu.memory_space<vmem>>, vector<1x4x384xbf16>
    %10 = vector.shape_cast %9 : vector<1x4x384xbf16> to vector<4x384xbf16>
    %c12 = arith.constant 12 : index
    %c0_11 = arith.constant 0 : index
    %11 = vector.load %arg5[%c12, %c0_11] : memref<16x384xbf16, #tpu.memory_space<vmem>>, vector<4x384xbf16>
    tpu.vector_store %arg5[%c12, %c0_11], %10 {strides = array<i32>} : memref<16x384xbf16, #tpu.memory_space<vmem>>, vector<4x384xbf16>,
    %c0_12 = arith.constant 0 : index
    %c0_13 = arith.constant 0 : index
    %12 = vector.load %arg2[%c0_12, %c0_13] : memref<32x16xbf16, #tpu.memory_space<vmem>>, vector<32x16xbf16>
    %c0_14 = arith.constant 0 : index
    %c0_15 = arith.constant 0 : index
    %13 = vector.load %arg5[%c0_14, %c0_15] : memref<16x384xbf16, #tpu.memory_space<vmem>>, vector<16x384xbf16>
    %cst = arith.constant dense<0.000000e+00> : vector<32x384xf32>
    %14 = tpu.matmul %12, %13, %cst {dimension_numbers = #tpu.dot_dimension_numbers<[1], [0], [0], [1], [0, 0, 1, 1], [], []>} : vector<32x16xbf16>, vector<16x384xbf16>, vector<32x384xf32> -> vector<32x384xf32>
    %c0_16 = arith.constant 0 : index
    %c0_17 = arith.constant 0 : index
    %15 = vector.load %arg3[%c0_16, %c0_17] : memref<32x1xf32, #tpu.memory_space<vmem>>, vector<32x1xf32>
    %16 = vector.broadcast %15 : vector<32x1xf32> to vector<32x384xf32>
    %17 = arith.addf %14, %16 : vector<32x384xf32>
    %c0_18 = arith.constant 0 : index
    %c0_19 = arith.constant 0 : index
    %c0_20 = arith.constant 0 : index
    %18 = vector.load %arg4[%c0_18, %c0_19, %c0_20] : memref<1x32x384xf32, #tpu.memory_space<vmem>>, vector<1x32x384xf32>
    %19 = vector.shape_cast %18 : vector<1x32x384xf32> to vector<32x384xf32>
    %20 = vector.shape_cast %17 : vector<32x384xf32> to vector<1x32x384xf32>
    tpu.vector_store %arg4[%c0_18, %c0_19, %c0_20], %20 {strides = array<i32>} : memref<1x32x384xf32, #tpu.memory_space<vmem>>, vector<1x32x384xf32>,
    return
  }
  func.func @transform_0(%arg0: i32) -> (i32, i32, i32) {
    %c0_i32 = arith.constant 0 : i32
    %c0_i32_0 = arith.constant 0 : i32
    %c0_i32_1 = arith.constant 0 : i32
    return %arg0, %c0_i32, %c0_i32_0 : i32, i32, i32
  }
  func.func @transform_1(%arg0: i32) -> (i32, i32) {
    %c0_i32 = arith.constant 0 : i32
    %c0_i32_0 = arith.constant 0 : i32
    %c0_i32_1 = arith.constant 0 : i32
    return %c0_i32, %c0_i32_0 : i32, i32
  }
  func.func @transform_2(%arg0: i32) -> (i32, i32) {
    %c0_i32 = arith.constant 0 : i32
    %c0_i32_0 = arith.constant 0 : i32
    %c0_i32_1 = arith.constant 0 : i32
    return %c0_i32, %c0_i32_0 : i32, i32
  }
  func.func @transform_3(%arg0: i32) -> (i32, i32, i32) {
    %c0_i32 = arith.constant 0 : i32
    %c0_i32_0 = arith.constant 0 : i32
    %c0_i32_1 = arith.constant 0 : i32
    return %arg0, %c0_i32, %c0_i32_0 : i32, i32, i32
  }
}

</mosaic_0001>

<llo_original>
// kernel: tile.8
$region0: #{tile.8}
  #allocation0 [shape = 's32[1]{0}', space=sflag, size = 0x4, scoped, tag = 'scoped memory for tile.8']
  %s0 = inlined_call_operand.vmem [shape: f32[8], index: 0, kind: input, shape index: {}]
  %s1 = inlined_call_operand.vmem [shape: f32[4,8], index: 1, kind: output, shape index: {}]
  // Predicated region
  $region2: #{tile.8} parent=0 // pred_check
    _
  $region3: #{tile.8} parent=0 // pred_check_branch
    %3 = sbr.rel (0) target = $region5
  $region4: #{tile.8} parent=0 // pred_region
    _
  $region5: #{tile.8} parent=0 // pred_fallthru
    _
  %v4 = vld [vmem:[%s0] ss:$0 sm:$0xff]
  %5 = vst [vmem:[%s1] sm:$0xf] %v4

// kernel: tile.0
$region0: #{tile.0}
  %s0 = inlined_call_operand.vmem [shape: f32[4,8], index: 0, kind: input, shape index: {}]
  %s1 = inlined_call_operand.vmem [shape: f32[32,1], index: 1, kind: output, shape index: {}]
  $region1: #{tile.0} parent=0
    #allocation0 [shape = 'u8[4096]{0}', space=vmem, size = 0x1000, scoped, tag = 'scoped mem for input reshape']
    %s3 = sshllo.u32 0, 4
    %v4 = vld [vmem:[%s0] sm:%s3]
    %5 = vst [vmem:[#allocation0] sm:%s3] %v4
    %v6 = vld [vmem:[#allocation0] sm:$0xf]
    %vm7 = vcmask 7168
    %8 = vst.msk [vmem:[%s1] ss:$8 sm:$0xf] %vm7, %v6
    %v9 = vld [vmem:[#allocation0] sm:$0xf]
    %10 = vrot.lane.b32.xlu0 %v9, 127
    %v11 = vpop.permute.xlu0 %10
    %vm12 = vcmask 7168
    %s13 = scalar_lea.vmem %s1, 1
    %14 = vst.msk [vmem:[%s13] ss:$8 sm:$0xf] %vm12, %v11
    %v15 = vld [vmem:[#allocation0] sm:$0xf]
    %16 = vrot.lane.b32.xlu0 %v15, 126
    %v17 = vpop.permute.xlu0 %16
    %vm18 = vcmask 7168
    %s19 = scalar_lea.vmem %s1, 2
    %20 = vst.msk [vmem:[%s19] ss:$8 sm:$0xf] %vm18, %v17
    %v21 = vld [vmem:[#allocation0] sm:$0xf]
    %22 = vrot.lane.b32.xlu0 %v21, 125
    %v23 = vpop.permute.xlu0 %22
    %vm24 = vcmask 7168
    %s25 = scalar_lea.vmem %s1, 3
    %26 = vst.msk [vmem:[%s25] ss:$8 sm:$0xf] %vm24, %v23
    %v27 = vld [vmem:[#allocation0] sm:$0xf]
    %28 = vrot.lane.b32.xlu0 %v27, 124
    %v29 = vpop.permute.xlu0 %28
    %vm30 = vcmask 7168
    %s31 = scalar_lea.vmem %s1, 4
    %32 = vst.msk [vmem:[%s31] ss:$8 sm:$0xf] %vm30, %v29
    %v33 = vld [vmem:[#allocation0] sm:$0xf]
    %34 = vrot.lane.b32.xlu0 %v33, 123
    %v35 = vpop.permute.xlu0 %34
    %vm36 = vcmask 7168
    %s37 = scalar_lea.vmem %s1, 5
    %38 = vst.msk [vmem:[%s37] ss:$8 sm:$0xf] %vm36, %v35
    %v39 = vld [vmem:[#allocation0] sm:$0xf]
    %40 = vrot.lane.b32.xlu0 %v39, 122
    %v41 = vpop.permute.xlu0 %40
    %vm42 = vcmask 7168
    %s43 = scalar_lea.vmem %s1, 6
    %44 = vst.msk [vmem:[%s43] ss:$8 sm:$0xf] %vm42, %v41
    %v45 = vld [vmem:[#allocation0] sm:$0xf]
    %46 = vrot.lane.b32.xlu0 %v45, 121
    %v47 = vpop.permute.xlu0 %46
    %vm48 = vcmask 7168
    %s49 = scalar_lea.vmem %s1, 7
    %50 = vst.msk [vmem:[%s49] ss:$8 sm:$0xf] %vm48, %v47

// kernel: conv_transpose2d_meta.1
$region0: #{conv_transpose2d_meta.1}
  #allocation0 [shape = 'u32[]', space=smem, size = 0x4, offset = 0x4, fixed_abs, tag = 'smem constant byte address 0x4 - core index']
  #allocation1 [shape = 'u32[144,128]{1,0:T(1,128)}', space=vmem, size = 0x12000, scoped, tag = 'internal scratch']
  #allocation2 [shape = 'bf16[16,384]{1,0:T(16,128)(2,1)}', space=vmem, size = 0x3000, scoped, tag = 'scratch operand']
  %s0 = inlined_call_operand.vmem [shape: bf16[2,4,456], index: 0, kind: input, shape index: {}]
  %s1 = inlined_call_operand.vmem [shape: bf16[32,16], index: 1, kind: input, shape index: {}]
  %s2 = inlined_call_operand.vmem [shape: f32[32,1], index: 2, kind: input, shape index: {}]
  %s3 = inlined_call_operand.vmem [shape: f32[2,32,384], index: 3, kind: output, shape index: {}]
  %s4 = sld [smem:[#allocation0]]
  $region45: #{conv_transpose2d_meta.1} parent=0
    _
  %s6 = ssub.s32 1, %s4
  %s7 = scalar_select 0, %s6, %s4
  loop: start=0, step=1, limit=4
  $region2: #{conv_transpose2d_meta.1} parent=0 // loop_pre_header
    _
  $region3: #{conv_transpose2d_meta.1} parent=0 // loop_header
    %s9 = sphi 0, %s13
    %p10 = scmp.ge.s32.totalorder %s9, 4
    %s19 = sphi 0, %s21
    %s22 = sphi 0, %s19
    %s23 = sphi 0, %s22
    %s39 = sphi 0, %s23
    %s43 = sphi 0, %s43
    %s45 = sphi 0, %s43
    %s46 = sphi 0, %s45
    %s60 = sphi 0, %s46
    %s64 = sphi 0, %s64
    %s66 = sphi 0, %s64
    %s67 = sphi 0, %s66
    %s81 = sphi 0, %s67
    %s87 = sphi 0, %s89
    %s90 = sphi 0, %s87
    %s91 = sphi 0, %s90
    %s107 = sphi 0, %s91
  $region4: #{conv_transpose2d_meta.1} parent=0 // loop_header_branch
    %12 = sbr.rel (%p10) target = $region8
  $region5: #{conv_transpose2d_meta.1} parent=0 // loop_body
    %s14 = ssub.s32 %s9, 1
    %s15 = ssub.s32 %s9, 2
    %s16 = sadd.s32 %s9, 1
    %s17 = ssub.s32 %s9, %s16
    %p18 = scmp.eq.s32.totalorder %s17, 0
    %s20 = sadd.s32 %s19, 1
    %s21 = scalar_select %p18, %s19, %s20
    %p24 = pneg %p18
    %p25 = scmp.eq.s32.totalorder %s9, 1
    %p26 = por %p24, %p25
    %p27 = scmp.ne.s32.totalorder %s19, %s22
    %p28 = scmp.eq.s32.totalorder %s9, 0
    %p29 = por %p27, %p28
    %p30 = scmp.ne.s32.totalorder %s19, %s22
    %p31 = scmp.eq.s32.totalorder %s14, 1
    %p32 = por %p30, %p31
    %p33 = scmp.ne.s32.totalorder %s22, %s23
    %p34 = scmp.eq.s32.totalorder %s14, 0
    %p35 = por %p33, %p34
    %p36 = scmp.ne.s32.totalorder %s22, %s23
    %p37 = scmp.eq.s32.totalorder %s15, 1
    %p38 = por %p36, %p37
    %p40 = scmp.ne.s32.totalorder %s23, %s39
    %p41 = scmp.eq.s32.totalorder %s15, 0
    %p42 = por %p40, %p41
    %s44 = sadd.s32 %s43, 1
    %p47 = scmp.eq.s32.totalorder %s9, 1
    %p48 = scmp.ne.s32.totalorder %s43, %s45
    %p49 = scmp.eq.s32.totalorder %s9, 0
    %p50 = por %p48, %p49
    %p51 = scmp.ne.s32.totalorder %s43, %s45
    %p52 = scmp.eq.s32.totalorder %s14, 1
    %p53 = por %p51, %p52
    %p54 = scmp.ne.s32.totalorder %s45, %s46
    %p55 = scmp.eq.s32.totalorder %s14, 0
    %p56 = por %p54, %p55
    %p57 = scmp.ne.s32.totalorder %s45, %s46
    %p58 = scmp.eq.s32.totalorder %s15, 1
    %p59 = por %p57, %p58
    %p61 = scmp.ne.s32.totalorder %s46, %s60
    %p62 = scmp.eq.s32.totalorder %s15, 0
    %p63 = por %p61, %p62
    %s65 = sadd.s32 %s64, 1
    %p68 = scmp.eq.s32.totalorder %s9, 1
    %p69 = scmp.ne.s32.totalorder %s64, %s66
    %p70 = scmp.eq.s32.totalorder %s9, 0
    %p71 = por %p69, %p70
    %p72 = scmp.ne.s32.totalorder %s64, %s66
    %p73 = scmp.eq.s32.totalorder %s14, 1
    %p74 = por %p72, %p73
    %p75 = scmp.ne.s32.totalorder %s66, %s67
    %p76 = scmp.eq.s32.totalorder %s14, 0
    %p77 = por %p75, %p76
    %p78 = scmp.ne.s32.totalorder %s66, %s67
    %p79 = scmp.eq.s32.totalorder %s15, 1
    %p80 = por %p78, %p79
    %p82 = scmp.ne.s32.totalorder %s67, %s81
    %p83 = scmp.eq.s32.totalorder %s15, 0
    %p84 = por %p82, %p83
    %s85 = ssub.s32 %s9, %s16
    %p86 = scmp.eq.s32.totalorder %s85, 0
    %s88 = sadd.s32 %s87, 1
    %s89 = scalar_select %p86, %s87, %s88
    %p92 = pneg %p86
    %p93 = scmp.eq.s32.totalorder %s9, 1
    %p94 = por %p92, %p93
    %p95 = scmp.ne.s32.totalorder %s87, %s90
    %p96 = scmp.eq.s32.totalorder %s9, 0
    %p97 = por %p95, %p96
    %p98 = scmp.ne.s32.totalorder %s87, %s90
    %p99 = scmp.eq.s32.totalorder %s14, 1
    %p100 = por %p98, %p99
    %p101 = scmp.ne.s32.totalorder %s90, %s91
    %p102 = scmp.eq.s32.totalorder %s14, 0
    %p103 = por %p101, %p102
    %p104 = scmp.ne.s32.totalorder %s90, %s91
    %p105 = scmp.eq.s32.totalorder %s15, 1
    %p106 = por %p104, %p105
    %p108 = scmp.ne.s32.totalorder %s91, %s107
    %p109 = scmp.eq.s32.totalorder %s15, 0
    %p110 = por %p108, %p109
    %p111 = scmp.le.s32.totalorder 1, %s9
    %p112 = scmp.lt.s32.totalorder %s9, 3
    %p113 = pnand %p111, %p112
    %p114 = pneg %p113
    // Predicated region
    $region9: #{conv_transpose2d_meta.1} parent=5 // pred_check
      _
    $region10: #{conv_transpose2d_meta.1} parent=5 // pred_check_branch
      %116 = sbr.rel (%p113) target = $region12
    $region11: #{conv_transpose2d_meta.1} parent=5 // pred_region
      %s117 = ssub.s32 %s9, 1
      // Predicated region
      $region13: #{conv_transpose2d_meta.1} parent=11 // pred_check
        %p118 = pneg %p56
      $region14: #{conv_transpose2d_meta.1} parent=11 // pred_check_branch
        %120 = sbr.rel (%p118) target = $region16
      $region15: #{conv_transpose2d_meta.1} parent=11 // pred_region
        _
      $region16: #{conv_transpose2d_meta.1} parent=11 // pred_fallthru
        _
      // Predicated region
      $region17: #{conv_transpose2d_meta.1} parent=11 // pred_check
        %p121 = pneg %p77
      $region18: #{conv_transpose2d_meta.1} parent=11 // pred_check_branch
        %123 = sbr.rel (%p121) target = $region20
      $region19: #{conv_transpose2d_meta.1} parent=11 // pred_region
        _
      $region20: #{conv_transpose2d_meta.1} parent=11 // pred_fallthru
        _
    $region12: #{conv_transpose2d_meta.1} parent=5 // pred_fallthru
      _
    %p124 = scmp.lt.s32.totalorder %s9, 2
    // Predicated region
    $region21: #{conv_transpose2d_meta.1} parent=5 // pred_check
      %p125 = pneg %p124
    $region22: #{conv_transpose2d_meta.1} parent=5 // pred_check_branch
      %127 = sbr.rel (%p125) target = $region24
    $region23: #{conv_transpose2d_meta.1} parent=5 // pred_region
      // Predicated region
      $region25: #{conv_transpose2d_meta.1} parent=23 // pred_check
        %p128 = pneg %p29
      $region26: #{conv_transpose2d_meta.1} parent=23 // pred_check_branch
        %130 = sbr.rel (%p128) target = $region28
      $region27: #{conv_transpose2d_meta.1} parent=23 // pred_region
        %p131 = scmp.lt.s32.totalorder %s9, 1
        %s132 = scalar_select %p131, %s9, 1
        %s133 = smul.addr %s132, 4
        %s134 = smul.addr %s133, 2
        %s135 = scalar_lea.vmem %s0, %s134
      $region28: #{conv_transpose2d_meta.1} parent=23 // pred_fallthru
        _
    $region24: #{conv_transpose2d_meta.1} parent=5 // pred_fallthru
      _
    %p136 = scmp.le.s32.totalorder 1, %s9
    %p137 = scmp.lt.s32.totalorder %s9, 3
    %p138 = pnand %p136, %p137
    %p139 = pneg %p138
    // Predicated region
    $region29: #{conv_transpose2d_meta.1} parent=5 // pred_check
      _
    $region30: #{conv_transpose2d_meta.1} parent=5 // pred_check_branch
      %141 = sbr.rel (%p138) target = $region32
    $region31: #{conv_transpose2d_meta.1} parent=5 // pred_region
      %s142 = ssub.s32 %s9, 1
      %p143 = scmp.lt.s32.totalorder %s14, 1
      %s144 = scalar_select %p143, %s14, 1
      %s145 = smul.addr %s144, 4
      %s146 = smul.addr %s145, 2
      %s147 = scalar_lea.vmem %s0, %s146
      %p148 = pneg %p35
      %p149 = pneg %p32
      %p150 = pneg %p56
      %p151 = pneg %p53
      %p152 = pneg %p77
      %p153 = pneg %p74
      %p154 = pneg %p103
      %p155 = pneg %p100
      %p156 = scmp.lt.s32.totalorder %s14, 1
      %s157 = scalar_select %p156, %s14, 1
      %s158 = smul.addr %s157, 12
      %s159 = smul.addr %s158, 8
      %s160 = scalar_lea.vmem %s3, %s159
      %p161 = scmp.lt.s32.totalorder %s14, 1
      %s162 = scalar_select %p161, %s14, 1
      %s163 = smul.addr %s162, 4
      %s164 = smul.addr %s163, 2
      %s165 = scalar_lea.vmem %s0, %s164
      %p166 = scmp.lt.s32.totalorder %s14, 1
      %s167 = scalar_select %p166, %s14, 1
      %s168 = smul.addr %s167, 12
      %s169 = smul.addr %s168, 8
      %s170 = scalar_lea.vmem %s3, %s169
      %v172 = vld [vmem:[%s165] sm:$0xff]
      %v174 = vcombine.high %v172, %v172
      %v176 = vunpack.c.l.s4 1983009808
      %v177 = vunpack.c.0.s8 %v176
      %v178 = vlaneseq
      %v179 = vshrl.u32 %v178, 7
      %v180 = vsub.s32 %v177, %v179
      %v181 = vrot.slane %v172, %v180
      %v183 = vunpack.c.l.s4 1983009808
      %v184 = vunpack.c.0.s8 %v183
      %v185 = vlaneseq
      %v186 = vshrl.u32 %v185, 7
      %v187 = vsub.s32 %v184, %v186
      %v188 = vrot.slane %v174, %v187
      %v189 = vcombine.high %v181, %v181
      %v190 = vcombine.high %v188, %v188
      %191 = vrot.lane.b32.xlu0 %v181, 103
      %v192 = vpop.permute.xlu0 %191
      %193 = vrot.lane.b32.xlu0 %v189, 103
      %v194 = vpop.permute.xlu0 %193
      %195 = vrot.lane.b32.xlu0 %v188, 103
      %v196 = vpop.permute.xlu0 %195
      %197 = vrot.lane.b32.xlu0 %v190, 103
      %v198 = vpop.permute.xlu0 %197
      %vm199 = vcmask 842752
      %v200 = vsel %vm199, %v192, %v194
      %v201 = vsel %vm199, %v194, %v196
      %v202 = vsel %vm199, %v196, %v198
      %206 = vst [vmem:[#allocation2] sm:$0x3] %v200
      %207 = vst [vmem:[#allocation2 + $0x8] sm:$0x3] %v201
      %208 = vst [vmem:[#allocation2 + $0x10] sm:$0x3] %v202
      %v209 = vld [vmem:[%s165] sm:$0xff]
      %v211 = vcombine.low %v209, %v209
      %v213 = vunpack.c.l.s4 1983009808
      %v214 = vunpack.c.0.s8 %v213
      %v215 = vlaneseq
      %v216 = vshrl.u32 %v215, 7
      %v217 = vsub.s32 %v214, %v216
      %v218 = vrot.slane %v211, %v217
      %v220 = vunpack.c.l.s4 1983009808
      %v221 = vunpack.c.0.s8 %v220
      %v222 = vlaneseq
      %v223 = vshrl.u32 %v222, 7
      %v224 = vsub.s32 %v221, %v223
      %v225 = vrot.slane %v209, %v224
      %v226 = vcombine.high %v218, %v218
      %v227 = vcombine.high %v225, %v225
      %228 = vrot.lane.b32.xlu0 %v218, 102
      %v229 = vpop.permute.xlu0 %228
      %230 = vrot.lane.b32.xlu0 %v226, 102
      %v231 = vpop.permute.xlu0 %230
      %232 = vrot.lane.b32.xlu0 %v225, 102
      %v233 = vpop.permute.xlu0 %232
      %234 = vrot.lane.b32.xlu0 %v227, 102
      %v235 = vpop.permute.xlu0 %234
      %vm236 = vcmask 834560
      %v237 = vsel %vm236, %v229, %v231
      %v238 = vsel %vm236, %v231, %v233
      %v239 = vsel %vm236, %v233, %v235
      %243 = vst [vmem:[#allocation2] sm:$0xc] %v237
      %244 = vst [vmem:[#allocation2 + $0x8] sm:$0xc] %v238
      %245 = vst [vmem:[#allocation2 + $0x10] sm:$0xc] %v239
      %v246 = vld [vmem:[%s165] sm:$0xff]
      %v248 = vcombine.high %v246, %v246
      %v250 = vunpack.c.l.s4 1983009808
      %v251 = vunpack.c.0.s8 %v250
      %v252 = vlaneseq
      %v253 = vshrl.u32 %v252, 7
      %v254 = vsub.s32 %v251, %v253
      %v255 = vrot.slane %v246, %v254
      %v257 = vunpack.c.l.s4 1983009808
      %v258 = vunpack.c.0.s8 %v257
      %v259 = vlaneseq
      %v260 = vshrl.u32 %v259, 7
      %v261 = vsub.s32 %v258, %v260
      %v262 = vrot.slane %v248, %v261
      %v263 = vcombine.low %v255, %v255
      %v264 = vcombine.low %v262, %v262
      %265 = vrot.lane.b32.xlu0 %v263, 79
      %v266 = vpop.permute.xlu0 %265
      %267 = vrot.lane.b32.xlu0 %v255, 79
      %v268 = vpop.permute.xlu0 %267
      %269 = vrot.lane.b32.xlu0 %v264, 79
      %v270 = vpop.permute.xlu0 %269
      %271 = vrot.lane.b32.xlu0 %v262, 79
      %v272 = vpop.permute.xlu0 %271
      %vm273 = vcmask 646144
      %v274 = vsel %vm273, %v266, %v268
      %v275 = vsel %vm273, %v268, %v270
      %v276 = vsel %vm273, %v270, %v272
      %280 = vst [vmem:[#allocation2] sm:$0x30] %v274
      %281 = vst [vmem:[#allocation2 + $0x8] sm:$0x30] %v275
      %282 = vst [vmem:[#allocation2 + $0x10] sm:$0x30] %v276
      %v283 = vld [vmem:[%s165] sm:$0xff]
      %v285 = vcombine.low %v283, %v283
      %v287 = vunpack.c.l.s4 1983009808
      %v288 = vunpack.c.0.s8 %v287
      %v289 = vlaneseq
      %v290 = vshrl.u32 %v289, 7
      %v291 = vsub.s32 %v288, %v290
      %v292 = vrot.slane %v285, %v291
      %v294 = vunpack.c.l.s4 1983009808
      %v295 = vunpack.c.0.s8 %v294
      %v296 = vlaneseq
      %v297 = vshrl.u32 %v296, 7
      %v298 = vsub.s32 %v295, %v297
      %v299 = vrot.slane %v283, %v298
      %v300 = vcombine.low %v292, %v292
      %v301 = vcombine.low %v299, %v299
      %302 = vrot.lane.b32.xlu0 %v300, 78
      %v303 = vpop.permute.xlu0 %302
      %304 = vrot.lane.b32.xlu0 %v292, 78
      %v305 = vpop.permute.xlu0 %304
      %306 = vrot.lane.b32.xlu0 %v301, 78
      %v307 = vpop.permute.xlu0 %306
      %308 = vrot.lane.b32.xlu0 %v299, 78
      %v309 = vpop.permute.xlu0 %308
      %vm310 = vcmask 637952
      %v311 = vsel %vm310, %v303, %v305
      %v312 = vsel %vm310, %v305, %v307
      %v313 = vsel %vm310, %v307, %v309
      %317 = vst [vmem:[#allocation2] sm:$0xc0] %v311
      %318 = vst [vmem:[#allocation2 + $0x8] sm:$0xc0] %v312
      %319 = vst [vmem:[#allocation2 + $0x10] sm:$0xc0] %v313
      %v320 = vld [vmem:[%s1] sm:$0xf]
      %v321 = vld [vmem:[%s1 + $0x4] sm:$0xf]
      %v322 = vld [vmem:[%s1 + $0x8] sm:$0xf]
      %v323 = vld [vmem:[%s1 + $0xc] sm:$0xf]
      %v324 = vld [vmem:[#allocation2] sm:$0xff]
      %v325 = vld [vmem:[#allocation2 + $0x8] sm:$0xff]
      %v326 = vld [vmem:[#allocation2 + $0x10] sm:$0xff]
      %v327 = vld [vmem:[%s2] sm:$0xff]
      %v328 = vld [vmem:[%s2 + $0x8] sm:$0xff]
      %v329 = vld [vmem:[%s2 + $0x10] sm:$0xff]
      %v330 = vld [vmem:[%s2 + $0x18] sm:$0xff]
      %332 = vset.pattern.permute.xlu0 0
      %333 = vperm.xlu0 %332, %v327
      %v334 = vpop.permute.xlu0 %333
      %337 = vset.pattern.permute.xlu0 0
      %338 = vperm.xlu0 %337, %v328
      %v339 = vpop.permute.xlu0 %338
      %342 = vset.pattern.permute.xlu0 0
      %343 = vperm.xlu0 %342, %v329
      %v344 = vpop.permute.xlu0 %343
      %347 = vset.pattern.permute.xlu0 0
      %348 = vperm.xlu0 %347, %v330
      %v349 = vpop.permute.xlu0 %348
      %v355 = vunpack.c.l.b16 %v320
      %v356 = vunpack.c.l.b16 %v321
      %v357 = vunpack.c.l.b16 %v322
      %v358 = vunpack.c.l.b16 %v323
      %v359 = vpack.c.b16 %v356, %v355
      %v360 = vpack.c.b16 %v358, %v357
      %vm361 = vcmask 130048
      %v363 = vsel %vm361, %v359, 0
      %v366 = vsel %vm361, %v360, 0
      %368 = vmatprep.subr.bf16.mxu0 %v325
      %369 = vmatpush1.bf16.msra.mxu0 %v324
      %370 = vmatprep.subr.bf16.mxu0 0
      %371 = vmatpush1.bf16.msra.mxu0 0
      %372 = vmatprep.subr.bf16.mxu0 0
      %373 = vmatpush1.bf16.msra.mxu0 0
      %374 = vmatprep.subr.bf16.mxu0 0
      %375 = vmatpush1.bf16.msra.mxu0 0
      %376 = vmatprep.subr.bf16.mxu0 0
      %377 = vmatpush1.bf16.msra.mxu0 0
      %378 = vmatprep.subr.bf16.mxu0 0
      %379 = vmatpush1.bf16.msra.mxu0 0
      %380 = vmatprep.subr.bf16.mxu0 0
      %381 = vmatpush1.bf16.msra.mxu0 0
      %382 = vmatprep.subr.bf16.mxu0 0
      %383 = vmatpush1.bf16.msra.mxu0 0
      %384 = vmatprep.subr.bf16.mxu0 0
      %385 = vmatpush1.bf16.msra.mxu0 0
      %386 = vmatprep.subr.bf16.mxu0 0
      %387 = vmatpush1.bf16.msra.mxu0 0
      %388 = vmatprep.subr.bf16.mxu0 0
      %389 = vmatpush1.bf16.msra.mxu0 0
      %390 = vmatprep.subr.bf16.mxu0 0
      %391 = vmatpush1.bf16.msra.mxu0 0
      %392 = vmatprep.subr.bf16.mxu0 0
      %393 = vmatpush1.bf16.msra.mxu0 0
      %394 = vmatprep.subr.bf16.mxu0 0
      %395 = vmatpush1.bf16.msra.mxu0 0
      %396 = vmatprep.subr.bf16.mxu0 0
      %397 = vmatpush1.bf16.msra.mxu0 0
      %398 = vmatprep.subr.bf16.mxu0 0
      %399 = vmatpush1.bf16.msra.mxu0 0
      %400 = vmatprep.mubr.bf16.mxu0 0
      %401 = vmatmul.mubr.bf16.gmra.mrb[0].mxu0 %v363
      %v402 = vpop.f32.mrb[0].mxu0
      %v403 = vadd.f32 %v334, %v402
      %v404 = vpop.f32.mrb[0].mxu0
      %v405 = vadd.f32 %v334, %v404
      %v406 = vpop.f32.mrb[0].mxu0
      %v407 = vadd.f32 %v339, %v406
      %v408 = vpop.f32.mrb[0].mxu0
      %v409 = vadd.f32 %v339, %v408
      %410 = vmatprep.mubr.bf16.mxu0 0
      %411 = vmatmul.mubr.bf16.gmra.mrb[0].mxu0 %v366
      %v412 = vpop.f32.mrb[0].mxu0
      %v413 = vadd.f32 %v344, %v412
      %v414 = vpop.f32.mrb[0].mxu0
      %v415 = vadd.f32 %v344, %v414
      %v416 = vpop.f32.mrb[0].mxu0
      %v417 = vadd.f32 %v349, %v416
      %v418 = vpop.f32.mrb[0].mxu0
      %v419 = vadd.f32 %v349, %v418
      %420 = vdwg.mxu0
      %421 = vmatprep.subr.bf16.mxu0 0
      %422 = vmatpush1.bf16.msra.mxu0 %v326
      %423 = vmatprep.subr.bf16.mxu0 0
      %424 = vmatpush1.bf16.msra.mxu0 0
      %425 = vmatprep.subr.bf16.mxu0 0
      %426 = vmatpush1.bf16.msra.mxu0 0
      %427 = vmatprep.subr.bf16.mxu0 0
      %428 = vmatpush1.bf16.msra.mxu0 0
      %429 = vmatprep.subr.bf16.mxu0 0
      %430 = vmatpush1.bf16.msra.mxu0 0
      %431 = vmatprep.subr.bf16.mxu0 0
      %432 = vmatpush1.bf16.msra.mxu0 0
      %433 = vmatprep.subr.bf16.mxu0 0
      %434 = vmatpush1.bf16.msra.mxu0 0
      %435 = vmatprep.subr.bf16.mxu0 0
      %436 = vmatpush1.bf16.msra.mxu0 0
      %437 = vmatprep.subr.bf16.mxu0 0
      %438 = vmatpush1.bf16.msra.mxu0 0
      %439 = vmatprep.subr.bf16.mxu0 0
      %440 = vmatpush1.bf16.msra.mxu0 0
      %441 = vmatprep.subr.bf16.mxu0 0
      %442 = vmatpush1.bf16.msra.mxu0 0
      %443 = vmatprep.subr.bf16.mxu0 0
      %444 = vmatpush1.bf16.msra.mxu0 0
      %445 = vmatprep.subr.bf16.mxu0 0
      %446 = vmatpush1.bf16.msra.mxu0 0
      %447 = vmatprep.subr.bf16.mxu0 0
      %448 = vmatpush1.bf16.msra.mxu0 0
      %449 = vmatprep.subr.bf16.mxu0 0
      %450 = vmatpush1.bf16.msra.mxu0 0
      %451 = vmatprep.subr.bf16.mxu0 0
      %452 = vmatpush1.bf16.msra.mxu0 0
      %453 = vmatprep.mubr.bf16.mxu0 0
      %454 = vmatmul.mubr.bf16.gmra.mrb[0].mxu0 %v363
      %v455 = vpop.f32.mrb[0].mxu0
      %v456 = vadd.f32 %v334, %v455
      %v457 = vpop.f32.mrb[0].mxu0
      %v458 = vpop.f32.mrb[0].mxu0
      %v459 = vadd.f32 %v339, %v458
      %v460 = vpop.f32.mrb[0].mxu0
      %461 = vmatprep.mubr.bf16.mxu0 0
      %462 = vmatmul.mubr.bf16.gmra.mrb[0].mxu0 %v366
      %v463 = vpop.f32.mrb[0].mxu0
      %v464 = vadd.f32 %v344, %v463
      %v465 = vpop.f32.mrb[0].mxu0
      %v466 = vpop.f32.mrb[0].mxu0
      %v467 = vadd.f32 %v349, %v466
      %v468 = vpop.f32.mrb[0].mxu0
      %469 = vdwg.mxu0
      %470 = vst [vmem:[%s170] sm:$0xff] %v403
      %471 = vst [vmem:[%s170 + $0x8] sm:$0xff] %v405
      %472 = vst [vmem:[%s170 + $0x10] sm:$0xff] %v456
      %473 = vst [vmem:[%s170 + $0x18] sm:$0xff] %v407
      %474 = vst [vmem:[%s170 + $0x20] sm:$0xff] %v409
      %475 = vst [vmem:[%s170 + $0x28] sm:$0xff] %v459
      %476 = vst [vmem:[%s170 + $0x30] sm:$0xff] %v413
      %477 = vst [vmem:[%s170 + $0x38] sm:$0xff] %v415
      %478 = vst [vmem:[%s170 + $0x40] sm:$0xff] %v464
      %479 = vst [vmem:[%s170 + $0x48] sm:$0xff] %v417
      %480 = vst [vmem:[%s170 + $0x50] sm:$0xff] %v419
      %481 = vst [vmem:[%s170 + $0x58] sm:$0xff] %v467
      %p482 = scmp.lt.s32.totalorder %s14, 1
      %s483 = scalar_select %p482, %s14, 1
      %s484 = smul.addr %s483, 12
      %s485 = smul.addr %s484, 8
      %s486 = scalar_lea.vmem %s3, %s485
      // Predicated region
      $region33: #{conv_transpose2d_meta.1} parent=31 // pred_check
        %p487 = pneg %p100
      $region34: #{conv_transpose2d_meta.1} parent=31 // pred_check_branch
        %489 = sbr.rel (%p487) target = $region36
      $region35: #{conv_transpose2d_meta.1} parent=31 // pred_region
        _
      $region36: #{conv_transpose2d_meta.1} parent=31 // pred_fallthru
        _
    $region32: #{conv_transpose2d_meta.1} parent=5 // pred_fallthru
      _
    %p490 = scmp.le.s32.totalorder 2, %s9
    // Predicated region
    $region37: #{conv_transpose2d_meta.1} parent=5 // pred_check
      %p491 = pneg %p490
    $region38: #{conv_transpose2d_meta.1} parent=5 // pred_check_branch
      %493 = sbr.rel (%p491) target = $region40
    $region39: #{conv_transpose2d_meta.1} parent=5 // pred_region
      %s494 = ssub.s32 %s9, 2
      // Predicated region
      $region41: #{conv_transpose2d_meta.1} parent=39 // pred_check
        %p495 = pneg %p106
      $region42: #{conv_transpose2d_meta.1} parent=39 // pred_check_branch
        %497 = sbr.rel (%p495) target = $region44
      $region43: #{conv_transpose2d_meta.1} parent=39 // pred_region
        %p498 = scmp.lt.s32.totalorder %s15, 1
        %s499 = scalar_select %p498, %s15, 1
        %s500 = smul.addr %s499, 12
        %s501 = smul.addr %s500, 8
        %s502 = scalar_lea.vmem %s3, %s501
      $region44: #{conv_transpose2d_meta.1} parent=39 // pred_fallthru
        _
    $region40: #{conv_transpose2d_meta.1} parent=5 // pred_fallthru
      _
  $region6: #{conv_transpose2d_meta.1} parent=0 // loop_footer
    %s13 = sadd.s32 1, %s9
  $region7: #{conv_transpose2d_meta.1} parent=0 // loop_footer_branch
    %8 = sbr.rel target = $region3
  $region8: #{conv_transpose2d_meta.1} parent=0 // loop_exit
    _

</llo_original>
